<compile_context>
chip_gen: v7x
topology: tpu7x:2x2x1
jax: 0.10.0
libtpu: 0.0.40
codegen_flags: <defaults>
</compile_context>

<pallas_src>
import jax
import jax.numpy as jnp
from jax import lax
from jax.experimental import pallas as pl
from jax.experimental.pallas import tpu as pltpu

LAST_CONV_SIZE = 1664          # densenet169 final feature channels
NUM_CLASSES = 2
BN_EPS = 1e-5
TB_MAX = 512                   # max batch rows handled per block / single shot


def head_kernel(x_ref, w_ref, b_ref, o_ref):
    """logits = x @ W'^T + b'   (BN already folded into W', b').

    x: (TB, K) bf16, W': (C, K) bf16 lane-dense, b': (1, C) f32, out: (TB, C) f32.
    """
    acc = lax.dot_general(
        x_ref[...], w_ref[...],
        dimension_numbers=(((1,), (1,)), ((), ())),   # contract K with K
        preferred_element_type=jnp.float32,
    )
    o_ref[...] = (acc + b_ref[...]).astype(o_ref.dtype)


def fold_bn_into_fc(params):
    """One-time fold of eval-mode BatchNorm1d into the Linear layer (runs OUTSIDE the forward path).

    h = (x - mean) * gamma / sqrt(var + eps) + beta = x * s + t
    logits = h @ W^T + b = x @ (W * s)^T + (W @ t + b)
    Fold is done in f32; the folded weight is cast to bf16 afterwards and kept
    in lane-dense (C, K) layout.
    """
    s = params["bn_gamma"] * lax.rsqrt(params["bn_var"] + BN_EPS)            # [K]
    t = params["bn_beta"] - params["bn_mean"] * s                            # [K]
    w_folded = (params["fc_w"].astype(jnp.float32) * s[None, :]).astype(jnp.bfloat16)  # [C, K]
    b_folded = (params["fc_w"].astype(jnp.float32) @ t + params["fc_b"]).reshape(1, -1)
    return w_folded, b_folded.astype(jnp.float32)


@jax.jit
def net_forward(feat_nchw, w_folded, b_folded):
    """feat_nchw: [B, 1664, 1, 1] backbone output. Returns logits [B, num_classes]."""
    B = feat_nchw.shape[0]
    K = LAST_CONV_SIZE
    C = w_folded.shape[0]
    # Flatten(); bf16 halves the dominant x DMA stream (f32 accumulation in the dot).
    x = feat_nchw.reshape(B, K).astype(jnp.bfloat16)
    # Dropout(p): identity at inference time.

    out_shape = jax.ShapeDtypeStruct((B, C), jnp.float32)

    if B <= TB_MAX:
        # Small batch: single shot, no grid / no pipeline — nothing to double-buffer,
        # whole operands live once in VMEM.
        return pl.pallas_call(head_kernel, out_shape=out_shape)(x, w_folded, b_folded)

    # Large batch: tile B so each block stays within scoped VMEM and the grid can be
    # megacore-sharded across TensorCores.
    return pl.pallas_call(
        head_kernel,
        out_shape=out_shape,
        grid_spec=pl.GridSpec(
            grid=(pl.cdiv(B, TB_MAX),),
            in_specs=[
                pl.BlockSpec((TB_MAX, K), lambda i: (i, 0)),   # x tile   [TB, 1664] bf16
                pl.BlockSpec((C, K), lambda i: (0, 0)),        # W'       [C, 1664]  bf16 (lane-dense)
                pl.BlockSpec((1, C), lambda i: (0, 0)),        # b'       [1, C]     f32
            ],
            out_specs=pl.BlockSpec((TB_MAX, C), lambda i: (i, 0)),
        ),
        compiler_params=pltpu.CompilerParams(dimension_semantics=("parallel",)),
    )(x, w_folded, b_folded)


def reference_forward(feat_nchw, params):
    B = feat_nchw.shape[0]
    x = feat_nchw.reshape(B, LAST_CONV_SIZE)
    h = (x - params["bn_mean"]) / jnp.sqrt(params["bn_var"] + BN_EPS)
    h = h * params["bn_gamma"] + params["bn_beta"]
    return h @ params["fc_w"].T + params["fc_b"]


def make_params(key, num_classes=NUM_CLASSES):
    ks = jax.random.split(key, 6)
    K = LAST_CONV_SIZE
    return {
        "bn_gamma": jax.random.uniform(ks[0], (K,), jnp.float32, 0.5, 1.5),
        "bn_beta": jax.random.normal(ks[1], (K,), jnp.float32) * 0.1,
        "bn_mean": jax.random.normal(ks[2], (K,), jnp.float32) * 0.1,
        "bn_var": jax.random.uniform(ks[3], (K,), jnp.float32, 0.5, 1.5),
        "fc_w": jax.random.normal(ks[4], (num_classes, K), jnp.float32) * 0.02,
        "fc_b": jax.random.normal(ks[5], (num_classes,), jnp.float32) * 0.01,
    }


if __name__ == "__main__":
    key = jax.random.PRNGKey(0)
    k_x, k_p = jax.random.split(key)

    B = 2
    # Backbone (densenet169.features) output for small NCHW images: [B, 1664, 1, 1]
    feat = jax.random.normal(k_x, (B, LAST_CONV_SIZE, 1, 1), jnp.float32)
    params = make_params(k_p)

    # BN/FC fold happens ONCE, outside the per-forward path.
    w_folded, b_folded = fold_bn_into_fc(params)
    w_folded, b_folded = jax.block_until_ready((w_folded, b_folded))

    logits = net_forward(feat, w_folded, b_folded)
    logits = jax.block_until_ready(logits)
    assert logits.shape == (B, NUM_CLASSES)

    # Tight check: kernel vs the identical bf16-folded GEMM evaluated in plain XLA.
    x_m = feat.reshape(B, LAST_CONV_SIZE).astype(jnp.bfloat16).astype(jnp.float32)
    ref_matched = x_m @ w_folded.astype(jnp.float32).T + b_folded
    assert jnp.allclose(logits, ref_matched, atol=1e-3, rtol=1e-3), "kernel GEMM mismatch"

    # Semantics check vs the original f32 head (bf16 inputs -> looser tolerance).
    ref = reference_forward(feat, params)
    assert jnp.allclose(logits, ref, atol=5e-2, rtol=5e-2), "mismatch vs reference forward"

    print("KERNEL_OK")
</pallas_src>

<mosaic_0001>
module attributes {stable_mosaic.version = 11 : i64} {
  func.func @head_kernel(%arg0: memref<2x1664xbf16, #tpu.memory_space<vmem>>, %arg1: memref<2x1664xbf16, #tpu.memory_space<vmem>>, %arg2: memref<1x2xf32, #tpu.memory_space<vmem>>, %arg3: memref<2x2xf32, #tpu.memory_space<vmem>>) attributes {dimension_semantics = [], scalar_prefetch = 0 : i64, scratch_operands = 0 : i64, tpu.core_type = #tpu.core_type<tc>} {
    %c0 = arith.constant 0 : index
    %c0_0 = arith.constant 0 : index
    %0 = vector.load %arg0[%c0, %c0_0] : memref<2x1664xbf16, #tpu.memory_space<vmem>>, vector<2x1664xbf16>
    %c0_1 = arith.constant 0 : index
    %c0_2 = arith.constant 0 : index
    %1 = vector.load %arg1[%c0_1, %c0_2] : memref<2x1664xbf16, #tpu.memory_space<vmem>>, vector<2x1664xbf16>
    %cst = arith.constant dense<0.000000e+00> : vector<2x2xf32>
    %2 = tpu.matmul %0, %1, %cst {dimension_numbers = #tpu.dot_dimension_numbers<[1], [1], [0], [0], [0, 0, 1, 0], [], []>} : vector<2x1664xbf16>, vector<2x1664xbf16>, vector<2x2xf32> -> vector<2x2xf32>
    %c0_3 = arith.constant 0 : index
    %c0_4 = arith.constant 0 : index
    %3 = vector.load %arg2[%c0_3, %c0_4] : memref<1x2xf32, #tpu.memory_space<vmem>>, vector<1x2xf32>
    %4 = vector.broadcast %3 : vector<1x2xf32> to vector<2x2xf32>
    %5 = arith.addf %2, %4 : vector<2x2xf32>
    %c0_5 = arith.constant 0 : index
    %c0_6 = arith.constant 0 : index
    %6 = vector.load %arg3[%c0_5, %c0_6] : memref<2x2xf32, #tpu.memory_space<vmem>>, vector<2x2xf32>
    tpu.vector_store %arg3[%c0_5, %c0_6], %5 {strides = array<i32>} : memref<2x2xf32, #tpu.memory_space<vmem>>, vector<2x2xf32>,
    return
  }
}

</mosaic_0001>

<llo_original>
// kernel: net_forward.1
$region0: #{net_forward.1}
  #allocation0 [shape = 'u32[]', space=smem, size = 0x4, offset = 0x4, fixed_abs, tag = 'smem constant byte address 0x4 - core index']
  #allocation1 [shape = 'u32[144,128]{1,0:T(1,128)}', space=vmem, size = 0x12000, scoped, tag = 'internal scratch']
  %s0 = inlined_call_operand.vmem [shape: bf16[2,1664], index: 0, kind: input, shape index: {}]
  %s1 = inlined_call_operand.vmem [shape: bf16[2,1664], index: 1, kind: input, shape index: {}]
  %s2 = inlined_call_operand.vmem [shape: f32[1,2], index: 2, kind: input, shape index: {}]
  %s3 = inlined_call_operand.hbm [shape: f32[2,2], index: 3, kind: output, shape index: {}]
  %s4 = sld [smem:[#allocation0]]
  $region22: #{net_forward.1} parent=0
    _
  %s6 = ssub.s32 1, %s4
  %s7 = scalar_select 0, %s6, %s4
  $region1: #{net_forward.1} parent=0
    #allocation2 [shape = 'u8[1024]{0}', space=vmem, size = 0x400, scoped, tag = 'output window, operand 0, single buffered']
    #allocation3 [shape = 's32[1]{0}', space=sflag, size = 0x4, scoped, tag = 'scoped memory for net_forward.1']
    %8 = vsyncpa [#allocation3], 0
    // Predicated region
    $region2: #{net_forward.1} parent=1 // pred_check
      _
    $region3: #{net_forward.1} parent=1 // pred_check_branch
      %10 = sbr.rel (0) target = $region5
    $region4: #{net_forward.1} parent=1 // pred_region
      _
    $region5: #{net_forward.1} parent=1 // pred_fallthru
      _
    // Predicated region
    $region6: #{net_forward.1} parent=1 // pred_check
      _
    $region7: #{net_forward.1} parent=1 // pred_check_branch
      %12 = sbr.rel (0) target = $region9
    $region8: #{net_forward.1} parent=1 // pred_region
      _
    $region9: #{net_forward.1} parent=1 // pred_fallthru
      _
    // Predicated region
    $region10: #{net_forward.1} parent=1 // pred_check
      _
    $region11: #{net_forward.1} parent=1 // pred_check_branch
      %14 = sbr.rel (0) target = $region13
    $region12: #{net_forward.1} parent=1 // pred_region
      _
    $region13: #{net_forward.1} parent=1 // pred_fallthru
      _
    %v16 = vld [vmem:[%s0] sm:$0xff]
    %v17 = vld [vmem:[%s0 + $0x8] sm:$0x1f]
    %v18 = vld [vmem:[%s1] sm:$0xff]
    %v19 = vld [vmem:[%s1 + $0x8] sm:$0x1f]
    %v20 = vld [vmem:[%s2] sm:$0x1]
    %v22 = vlaneseq
    %v23 = vshrl.u32 %v22, 7
    %v24 = vsub.s32 0, %v23
    %v25 = vrot.slane %v20, %v24
    %v29 = vcombine.high %v16, %v16
    %v31 = vunpack.c.l.s4 1966171168
    %v32 = vunpack.c.0.s8 %v31
    %v33 = vlaneseq
    %v34 = vshrl.u32 %v33, 7
    %v35 = vsub.s32 %v32, %v34
    %v36 = vrot.slane %v16, %v35
    %v38 = vunpack.c.l.s4 1966171168
    %v39 = vunpack.c.0.s8 %v38
    %v40 = vlaneseq
    %v41 = vshrl.u32 %v40, 7
    %v42 = vsub.s32 %v39, %v41
    %v43 = vrot.slane %v29, %v42
    %v44 = vcombine.high %v36, %v36
    %v45 = vcombine.high %v43, %v43
    %v47 = vunpack.c.l.s4 1966171168
    %v48 = vunpack.c.0.s8 %v47
    %v49 = vlaneseq
    %v50 = vshrl.u32 %v49, 7
    %v51 = vsub.s32 %v48, %v50
    %v52 = vrot.slane %v36, %v51
    %v54 = vunpack.c.l.s4 1966171168
    %v55 = vunpack.c.0.s8 %v54
    %v56 = vlaneseq
    %v57 = vshrl.u32 %v56, 7
    %v58 = vsub.s32 %v55, %v57
    %v59 = vrot.slane %v43, %v58
    %v61 = vunpack.c.l.s4 1966171168
    %v62 = vunpack.c.0.s8 %v61
    %v63 = vlaneseq
    %v64 = vshrl.u32 %v63, 7
    %v65 = vsub.s32 %v62, %v64
    %v66 = vrot.slane %v44, %v65
    %v68 = vunpack.c.l.s4 1966171168
    %v69 = vunpack.c.0.s8 %v68
    %v70 = vlaneseq
    %v71 = vshrl.u32 %v70, 7
    %v72 = vsub.s32 %v69, %v71
    %v73 = vrot.slane %v45, %v72
    %v74 = vcombine.high %v52, %v52
    %v75 = vcombine.high %v59, %v59
    %v76 = vcombine.high %v66, %v66
    %v77 = vcombine.high %v73, %v73
    %v78 = vcombine.high %v17, %v17
    %v80 = vunpack.c.l.s4 1966171168
    %v81 = vunpack.c.0.s8 %v80
    %v82 = vlaneseq
    %v83 = vshrl.u32 %v82, 7
    %v84 = vsub.s32 %v81, %v83
    %v85 = vrot.slane %v17, %v84
    %v87 = vunpack.c.l.s4 1966171168
    %v88 = vunpack.c.0.s8 %v87
    %v89 = vlaneseq
    %v90 = vshrl.u32 %v89, 7
    %v91 = vsub.s32 %v88, %v90
    %v92 = vrot.slane %v78, %v91
    %v93 = vcombine.high %v85, %v85
    %v95 = vunpack.c.l.s4 1966171168
    %v96 = vunpack.c.0.s8 %v95
    %v97 = vlaneseq
    %v98 = vshrl.u32 %v97, 7
    %v99 = vsub.s32 %v96, %v98
    %v100 = vrot.slane %v85, %v99
    %v102 = vunpack.c.l.s4 1966171168
    %v103 = vunpack.c.0.s8 %v102
    %v104 = vlaneseq
    %v105 = vshrl.u32 %v104, 7
    %v106 = vsub.s32 %v103, %v105
    %v107 = vrot.slane %v92, %v106
    %v109 = vunpack.c.l.s4 1966171168
    %v110 = vunpack.c.0.s8 %v109
    %v111 = vlaneseq
    %v112 = vshrl.u32 %v111, 7
    %v113 = vsub.s32 %v110, %v112
    %v114 = vrot.slane %v93, %v113
    %v115 = vcombine.high %v100, %v100
    %v116 = vcombine.high %v114, %v114
    %v132 = vcombine.high %v18, %v18
    %v134 = vunpack.c.l.s4 1966171168
    %v135 = vunpack.c.0.s8 %v134
    %v136 = vlaneseq
    %v137 = vshrl.u32 %v136, 7
    %v138 = vsub.s32 %v135, %v137
    %v139 = vrot.slane %v18, %v138
    %v141 = vunpack.c.l.s4 1966171168
    %v142 = vunpack.c.0.s8 %v141
    %v143 = vlaneseq
    %v144 = vshrl.u32 %v143, 7
    %v145 = vsub.s32 %v142, %v144
    %v146 = vrot.slane %v132, %v145
    %v147 = vcombine.high %v139, %v139
    %v148 = vcombine.high %v146, %v146
    %v150 = vunpack.c.l.s4 1966171168
    %v151 = vunpack.c.0.s8 %v150
    %v152 = vlaneseq
    %v153 = vshrl.u32 %v152, 7
    %v154 = vsub.s32 %v151, %v153
    %v155 = vrot.slane %v139, %v154
    %v157 = vunpack.c.l.s4 1966171168
    %v158 = vunpack.c.0.s8 %v157
    %v159 = vlaneseq
    %v160 = vshrl.u32 %v159, 7
    %v161 = vsub.s32 %v158, %v160
    %v162 = vrot.slane %v146, %v161
    %v164 = vunpack.c.l.s4 1966171168
    %v165 = vunpack.c.0.s8 %v164
    %v166 = vlaneseq
    %v167 = vshrl.u32 %v166, 7
    %v168 = vsub.s32 %v165, %v167
    %v169 = vrot.slane %v147, %v168
    %v171 = vunpack.c.l.s4 1966171168
    %v172 = vunpack.c.0.s8 %v171
    %v173 = vlaneseq
    %v174 = vshrl.u32 %v173, 7
    %v175 = vsub.s32 %v172, %v174
    %v176 = vrot.slane %v148, %v175
    %v177 = vcombine.high %v155, %v155
    %v178 = vcombine.high %v162, %v162
    %v179 = vcombine.high %v169, %v169
    %v180 = vcombine.high %v176, %v176
    %v181 = vcombine.high %v19, %v19
    %v183 = vunpack.c.l.s4 1966171168
    %v184 = vunpack.c.0.s8 %v183
    %v185 = vlaneseq
    %v186 = vshrl.u32 %v185, 7
    %v187 = vsub.s32 %v184, %v186
    %v188 = vrot.slane %v19, %v187
    %v190 = vunpack.c.l.s4 1966171168
    %v191 = vunpack.c.0.s8 %v190
    %v192 = vlaneseq
    %v193 = vshrl.u32 %v192, 7
    %v194 = vsub.s32 %v191, %v193
    %v195 = vrot.slane %v181, %v194
    %v196 = vcombine.high %v188, %v188
    %v198 = vunpack.c.l.s4 1966171168
    %v199 = vunpack.c.0.s8 %v198
    %v200 = vlaneseq
    %v201 = vshrl.u32 %v200, 7
    %v202 = vsub.s32 %v199, %v201
    %v203 = vrot.slane %v188, %v202
    %v205 = vunpack.c.l.s4 1966171168
    %v206 = vunpack.c.0.s8 %v205
    %v207 = vlaneseq
    %v208 = vshrl.u32 %v207, 7
    %v209 = vsub.s32 %v206, %v208
    %v210 = vrot.slane %v195, %v209
    %v212 = vunpack.c.l.s4 1966171168
    %v213 = vunpack.c.0.s8 %v212
    %v214 = vlaneseq
    %v215 = vshrl.u32 %v214, 7
    %v216 = vsub.s32 %v213, %v215
    %v217 = vrot.slane %v196, %v216
    %v218 = vcombine.high %v203, %v203
    %v219 = vcombine.high %v217, %v217
    %233 = vmatprep.subr.bf16.mxu0 %v169
    %234 = vmatpush1.bf16.xpose.msra.mxu0 %v155
    %235 = vmatprep.subr.bf16.mxu0 0
    %236 = vmatpush1.bf16.xpose.msra.mxu0 0
    %237 = vmatprep.subr.bf16.mxu0 0
    %238 = vmatpush1.bf16.xpose.msra.mxu0 0
    %239 = vmatprep.subr.bf16.mxu0 0
    %240 = vmatpush1.bf16.xpose.msra.mxu0 0
    %241 = vmatprep.subr.bf16.mxu0 0
    %242 = vmatpush1.bf16.xpose.msra.mxu0 0
    %243 = vmatprep.subr.bf16.mxu0 0
    %244 = vmatpush1.bf16.xpose.msra.mxu0 0
    %245 = vmatprep.subr.bf16.mxu0 0
    %246 = vmatpush1.bf16.xpose.msra.mxu0 0
    %247 = vmatprep.subr.bf16.mxu0 0
    %248 = vmatpush1.bf16.xpose.msra.mxu0 0
    %249 = vmatprep.subr.bf16.mxu0 0
    %250 = vmatpush1.bf16.xpose.msra.mxu0 0
    %251 = vmatprep.subr.bf16.mxu0 0
    %252 = vmatpush1.bf16.xpose.msra.mxu0 0
    %253 = vmatprep.subr.bf16.mxu0 0
    %254 = vmatpush1.bf16.xpose.msra.mxu0 0
    %255 = vmatprep.subr.bf16.mxu0 0
    %256 = vmatpush1.bf16.xpose.msra.mxu0 0
    %257 = vmatprep.subr.bf16.mxu0 0
    %258 = vmatpush1.bf16.xpose.msra.mxu0 0
    %259 = vmatprep.subr.bf16.mxu0 0
    %260 = vmatpush1.bf16.xpose.msra.mxu0 0
    %261 = vmatprep.subr.bf16.mxu0 0
    %262 = vmatpush1.bf16.xpose.msra.mxu0 0
    %263 = vmatprep.subr.bf16.mxu0 0
    %264 = vmatpush1.bf16.xpose.msra.mxu0 0
    %265 = vmatprep.mubr.bf16.mxu0 %v66
    %266 = vmatmul.mubr.bf16.gmra.mrb[0].mxu0 %v52
    %v267 = vpop.f32.mrb[0].mxu0
    %v268 = vadd.f32 %v25, %v267
    %v269 = vpop.f32.mrb[0].mxu0
    %v270 = vpop.f32.mrb[0].mxu0
    %v271 = vpop.f32.mrb[0].mxu0
    %272 = vdwg.mxu0
    %273 = vmatprep.subr.bf16.mxu0 %v179
    %274 = vmatpush1.bf16.xpose.msra.mxu0 %v177
    %275 = vmatprep.subr.bf16.mxu0 0
    %276 = vmatpush1.bf16.xpose.msra.mxu0 0
    %277 = vmatprep.subr.bf16.mxu0 0
    %278 = vmatpush1.bf16.xpose.msra.mxu0 0
    %279 = vmatprep.subr.bf16.mxu0 0
    %280 = vmatpush1.bf16.xpose.msra.mxu0 0
    %281 = vmatprep.subr.bf16.mxu0 0
    %282 = vmatpush1.bf16.xpose.msra.mxu0 0
    %283 = vmatprep.subr.bf16.mxu0 0
    %284 = vmatpush1.bf16.xpose.msra.mxu0 0
    %285 = vmatprep.subr.bf16.mxu0 0
    %286 = vmatpush1.bf16.xpose.msra.mxu0 0
    %287 = vmatprep.subr.bf16.mxu0 0
    %288 = vmatpush1.bf16.xpose.msra.mxu0 0
    %289 = vmatprep.subr.bf16.mxu0 0
    %290 = vmatpush1.bf16.xpose.msra.mxu0 0
    %291 = vmatprep.subr.bf16.mxu0 0
    %292 = vmatpush1.bf16.xpose.msra.mxu0 0
    %293 = vmatprep.subr.bf16.mxu0 0
    %294 = vmatpush1.bf16.xpose.msra.mxu0 0
    %295 = vmatprep.subr.bf16.mxu0 0
    %296 = vmatpush1.bf16.xpose.msra.mxu0 0
    %297 = vmatprep.subr.bf16.mxu0 0
    %298 = vmatpush1.bf16.xpose.msra.mxu0 0
    %299 = vmatprep.subr.bf16.mxu0 0
    %300 = vmatpush1.bf16.xpose.msra.mxu0 0
    %301 = vmatprep.subr.bf16.mxu0 0
    %302 = vmatpush1.bf16.xpose.msra.mxu0 0
    %303 = vmatprep.subr.bf16.mxu0 0
    %304 = vmatpush1.bf16.xpose.msra.mxu0 0
    %305 = vmatprep.mubr.bf16.mxu0 %v76
    %306 = vmatmul.mubr.bf16.gmra.mrb[0].mxu0 %v74
    %v307 = vpop.f32.mrb[0].mxu0
    %v308 = vadd.f32 %v268, %v307
    %v309 = vpop.f32.mrb[0].mxu0
    %v310 = vpop.f32.mrb[0].mxu0
    %v311 = vpop.f32.mrb[0].mxu0
    %312 = vdwg.mxu0
    %313 = vmatprep.subr.bf16.mxu0 %v176
    %314 = vmatpush1.bf16.xpose.msra.mxu0 %v162
    %315 = vmatprep.subr.bf16.mxu0 0
    %316 = vmatpush1.bf16.xpose.msra.mxu0 0
    %317 = vmatprep.subr.bf16.mxu0 0
    %318 = vmatpush1.bf16.xpose.msra.mxu0 0
    %319 = vmatprep.subr.bf16.mxu0 0
    %320 = vmatpush1.bf16.xpose.msra.mxu0 0
    %321 = vmatprep.subr.bf16.mxu0 0
    %322 = vmatpush1.bf16.xpose.msra.mxu0 0
    %323 = vmatprep.subr.bf16.mxu0 0
    %324 = vmatpush1.bf16.xpose.msra.mxu0 0
    %325 = vmatprep.subr.bf16.mxu0 0
    %326 = vmatpush1.bf16.xpose.msra.mxu0 0
    %327 = vmatprep.subr.bf16.mxu0 0
    %328 = vmatpush1.bf16.xpose.msra.mxu0 0
    %329 = vmatprep.subr.bf16.mxu0 0
    %330 = vmatpush1.bf16.xpose.msra.mxu0 0
    %331 = vmatprep.subr.bf16.mxu0 0
    %332 = vmatpush1.bf16.xpose.msra.mxu0 0
    %333 = vmatprep.subr.bf16.mxu0 0
    %334 = vmatpush1.bf16.xpose.msra.mxu0 0
    %335 = vmatprep.subr.bf16.mxu0 0
    %336 = vmatpush1.bf16.xpose.msra.mxu0 0
    %337 = vmatprep.subr.bf16.mxu0 0
    %338 = vmatpush1.bf16.xpose.msra.mxu0 0
    %339 = vmatprep.subr.bf16.mxu0 0
    %340 = vmatpush1.bf16.xpose.msra.mxu0 0
    %341 = vmatprep.subr.bf16.mxu0 0
    %342 = vmatpush1.bf16.xpose.msra.mxu0 0
    %343 = vmatprep.subr.bf16.mxu0 0
    %344 = vmatpush1.bf16.xpose.msra.mxu0 0
    %345 = vmatprep.mubr.bf16.mxu0 %v73
    %346 = vmatmul.mubr.bf16.gmra.mrb[0].mxu0 %v59
    %v347 = vpop.f32.mrb[0].mxu0
    %v348 = vadd.f32 %v308, %v347
    %v349 = vpop.f32.mrb[0].mxu0
    %v350 = vpop.f32.mrb[0].mxu0
    %v351 = vpop.f32.mrb[0].mxu0
    %352 = vdwg.mxu0
    %353 = vmatprep.subr.bf16.mxu0 %v180
    %354 = vmatpush1.bf16.xpose.msra.mxu0 %v178
    %355 = vmatprep.subr.bf16.mxu0 0
    %356 = vmatpush1.bf16.xpose.msra.mxu0 0
    %357 = vmatprep.subr.bf16.mxu0 0
    %358 = vmatpush1.bf16.xpose.msra.mxu0 0
    %359 = vmatprep.subr.bf16.mxu0 0
    %360 = vmatpush1.bf16.xpose.msra.mxu0 0
    %361 = vmatprep.subr.bf16.mxu0 0
    %362 = vmatpush1.bf16.xpose.msra.mxu0 0
    %363 = vmatprep.subr.bf16.mxu0 0
    %364 = vmatpush1.bf16.xpose.msra.mxu0 0
    %365 = vmatprep.subr.bf16.mxu0 0
    %366 = vmatpush1.bf16.xpose.msra.mxu0 0
    %367 = vmatprep.subr.bf16.mxu0 0
    %368 = vmatpush1.bf16.xpose.msra.mxu0 0
    %369 = vmatprep.subr.bf16.mxu0 0
    %370 = vmatpush1.bf16.xpose.msra.mxu0 0
    %371 = vmatprep.subr.bf16.mxu0 0
    %372 = vmatpush1.bf16.xpose.msra.mxu0 0
    %373 = vmatprep.subr.bf16.mxu0 0
    %374 = vmatpush1.bf16.xpose.msra.mxu0 0
    %375 = vmatprep.subr.bf16.mxu0 0
    %376 = vmatpush1.bf16.xpose.msra.mxu0 0
    %377 = vmatprep.subr.bf16.mxu0 0
    %378 = vmatpush1.bf16.xpose.msra.mxu0 0
    %379 = vmatprep.subr.bf16.mxu0 0
    %380 = vmatpush1.bf16.xpose.msra.mxu0 0
    %381 = vmatprep.subr.bf16.mxu0 0
    %382 = vmatpush1.bf16.xpose.msra.mxu0 0
    %383 = vmatprep.subr.bf16.mxu0 0
    %384 = vmatpush1.bf16.xpose.msra.mxu0 0
    %385 = vmatprep.mubr.bf16.mxu0 %v77
    %386 = vmatmul.mubr.bf16.gmra.mrb[0].mxu0 %v75
    %v387 = vpop.f32.mrb[0].mxu0
    %v388 = vadd.f32 %v348, %v387
    %v389 = vpop.f32.mrb[0].mxu0
    %v390 = vpop.f32.mrb[0].mxu0
    %v391 = vpop.f32.mrb[0].mxu0
    %392 = vdwg.mxu0
    %393 = vmatprep.subr.bf16.mxu0 %v217
    %394 = vmatpush1.bf16.xpose.msra.mxu0 %v203
    %395 = vmatprep.subr.bf16.mxu0 0
    %396 = vmatpush1.bf16.xpose.msra.mxu0 0
    %397 = vmatprep.subr.bf16.mxu0 0
    %398 = vmatpush1.bf16.xpose.msra.mxu0 0
    %399 = vmatprep.subr.bf16.mxu0 0
    %400 = vmatpush1.bf16.xpose.msra.mxu0 0
    %401 = vmatprep.subr.bf16.mxu0 0
    %402 = vmatpush1.bf16.xpose.msra.mxu0 0
    %403 = vmatprep.subr.bf16.mxu0 0
    %404 = vmatpush1.bf16.xpose.msra.mxu0 0
    %405 = vmatprep.subr.bf16.mxu0 0
    %406 = vmatpush1.bf16.xpose.msra.mxu0 0
    %407 = vmatprep.subr.bf16.mxu0 0
    %408 = vmatpush1.bf16.xpose.msra.mxu0 0
    %409 = vmatprep.subr.bf16.mxu0 0
    %410 = vmatpush1.bf16.xpose.msra.mxu0 0
    %411 = vmatprep.subr.bf16.mxu0 0
    %412 = vmatpush1.bf16.xpose.msra.mxu0 0
    %413 = vmatprep.subr.bf16.mxu0 0
    %414 = vmatpush1.bf16.xpose.msra.mxu0 0
    %415 = vmatprep.subr.bf16.mxu0 0
    %416 = vmatpush1.bf16.xpose.msra.mxu0 0
    %417 = vmatprep.subr.bf16.mxu0 0
    %418 = vmatpush1.bf16.xpose.msra.mxu0 0
    %419 = vmatprep.subr.bf16.mxu0 0
    %420 = vmatpush1.bf16.xpose.msra.mxu0 0
    %421 = vmatprep.subr.bf16.mxu0 0
    %422 = vmatpush1.bf16.xpose.msra.mxu0 0
    %423 = vmatprep.subr.bf16.mxu0 0
    %424 = vmatpush1.bf16.xpose.msra.mxu0 0
    %425 = vmatprep.mubr.bf16.mxu0 %v114
    %426 = vmatmul.mubr.bf16.gmra.mrb[0].mxu0 %v100
    %v427 = vpop.f32.mrb[0].mxu0
    %v428 = vadd.f32 %v388, %v427
    %v429 = vpop.f32.mrb[0].mxu0
    %v430 = vpop.f32.mrb[0].mxu0
    %v431 = vpop.f32.mrb[0].mxu0
    %432 = vdwg.mxu0
    %433 = vmatprep.subr.bf16.mxu0 %v219
    %434 = vmatpush1.bf16.xpose.msra.mxu0 %v218
    %435 = vmatprep.subr.bf16.mxu0 0
    %436 = vmatpush1.bf16.xpose.msra.mxu0 0
    %437 = vmatprep.subr.bf16.mxu0 0
    %438 = vmatpush1.bf16.xpose.msra.mxu0 0
    %439 = vmatprep.subr.bf16.mxu0 0
    %440 = vmatpush1.bf16.xpose.msra.mxu0 0
    %441 = vmatprep.subr.bf16.mxu0 0
    %442 = vmatpush1.bf16.xpose.msra.mxu0 0
    %443 = vmatprep.subr.bf16.mxu0 0
    %444 = vmatpush1.bf16.xpose.msra.mxu0 0
    %445 = vmatprep.subr.bf16.mxu0 0
    %446 = vmatpush1.bf16.xpose.msra.mxu0 0
    %447 = vmatprep.subr.bf16.mxu0 0
    %448 = vmatpush1.bf16.xpose.msra.mxu0 0
    %449 = vmatprep.subr.bf16.mxu0 0
    %450 = vmatpush1.bf16.xpose.msra.mxu0 0
    %451 = vmatprep.subr.bf16.mxu0 0
    %452 = vmatpush1.bf16.xpose.msra.mxu0 0
    %453 = vmatprep.subr.bf16.mxu0 0
    %454 = vmatpush1.bf16.xpose.msra.mxu0 0
    %455 = vmatprep.subr.bf16.mxu0 0
    %456 = vmatpush1.bf16.xpose.msra.mxu0 0
    %457 = vmatprep.subr.bf16.mxu0 0
    %458 = vmatpush1.bf16.xpose.msra.mxu0 0
    %459 = vmatprep.subr.bf16.mxu0 0
    %460 = vmatpush1.bf16.xpose.msra.mxu0 0
    %461 = vmatprep.subr.bf16.mxu0 0
    %462 = vmatpush1.bf16.xpose.msra.mxu0 0
    %463 = vmatprep.subr.bf16.mxu0 0
    %464 = vmatpush1.bf16.xpose.msra.mxu0 0
    %465 = vmatprep.mubr.bf16.mxu0 %v116
    %466 = vmatmul.mubr.bf16.gmra.mrb[0].mxu0 %v115
    %v467 = vpop.f32.mrb[0].mxu0
    %v468 = vadd.f32 %v428, %v467
    %v469 = vpop.f32.mrb[0].mxu0
    %v470 = vpop.f32.mrb[0].mxu0
    %v471 = vpop.f32.mrb[0].mxu0
    %472 = vdwg.mxu0
    %473 = vmatprep.subr.bf16.mxu0 0
    %474 = vmatpush1.bf16.xpose.msra.mxu0 %v210
    %475 = vmatprep.subr.bf16.mxu0 0
    %476 = vmatpush1.bf16.xpose.msra.mxu0 0
    %477 = vmatprep.subr.bf16.mxu0 0
    %478 = vmatpush1.bf16.xpose.msra.mxu0 0
    %479 = vmatprep.subr.bf16.mxu0 0
    %480 = vmatpush1.bf16.xpose.msra.mxu0 0
    %481 = vmatprep.subr.bf16.mxu0 0
    %482 = vmatpush1.bf16.xpose.msra.mxu0 0
    %483 = vmatprep.subr.bf16.mxu0 0
    %484 = vmatpush1.bf16.xpose.msra.mxu0 0
    %485 = vmatprep.subr.bf16.mxu0 0
    %486 = vmatpush1.bf16.xpose.msra.mxu0 0
    %487 = vmatprep.subr.bf16.mxu0 0
    %488 = vmatpush1.bf16.xpose.msra.mxu0 0
    %489 = vmatprep.subr.bf16.mxu0 0
    %490 = vmatpush1.bf16.xpose.msra.mxu0 0
    %491 = vmatprep.subr.bf16.mxu0 0
    %492 = vmatpush1.bf16.xpose.msra.mxu0 0
    %493 = vmatprep.subr.bf16.mxu0 0
    %494 = vmatpush1.bf16.xpose.msra.mxu0 0
    %495 = vmatprep.subr.bf16.mxu0 0
    %496 = vmatpush1.bf16.xpose.msra.mxu0 0
    %497 = vmatprep.subr.bf16.mxu0 0
    %498 = vmatpush1.bf16.xpose.msra.mxu0 0
    %499 = vmatprep.subr.bf16.mxu0 0
    %500 = vmatpush1.bf16.xpose.msra.mxu0 0
    %501 = vmatprep.subr.bf16.mxu0 0
    %502 = vmatpush1.bf16.xpose.msra.mxu0 0
    %503 = vmatprep.subr.bf16.mxu0 0
    %504 = vmatpush1.bf16.xpose.msra.mxu0 0
    %505 = vmatprep.mubr.bf16.mxu0 0
    %506 = vmatmul.mubr.bf16.gmra.mrb[0].mxu0 %v107
    %v507 = vpop.f32.mrb[0].mxu0
    %v508 = vadd.f32 %v468, %v507
    %v509 = vpop.f32.mrb[0].mxu0
    %v510 = vpop.f32.mrb[0].mxu0
    %v511 = vpop.f32.mrb[0].mxu0
    %512 = vdwg.mxu0
    %vm513 = vcmask 9216
    %514 = vst.msk [vmem:[#allocation2] sm:$0x3] %vm513, %v508
    // Predicated region
    $region14: #{net_forward.1} parent=1 // pred_check
      _
    $region15: #{net_forward.1} parent=1 // pred_check_branch
      %516 = sbr.rel (0) target = $region17
    $region16: #{net_forward.1} parent=1 // pred_region
      %s518 = ssub.s32 32, 32
      %519 = vsyncadd [#allocation3], %s518
      %s521 = sshll.u32 [#allocation2], 4
      %s522 = int_to_ptr.vmem [resolvable:$true] %s521
      %524 = dma.vmem_to_hbm [thread:$0]  %s522, 32, %s3, [#allocation3]
    $region17: #{net_forward.1} parent=1 // pred_fallthru
      _
    // Predicated region
    $region18: #{net_forward.1} parent=1 // pred_check
      _
    $region19: #{net_forward.1} parent=1 // pred_check_branch
      %526 = sbr.rel (0) target = $region21
    $region20: #{net_forward.1} parent=1 // pred_region
      %527 = dma.done [#allocation3], 32
    $region21: #{net_forward.1} parent=1 // pred_fallthru
      _
    %528 = vsyncpa [#allocation3], 1

</llo_original>
